<compile_context>
chip_gen: v6e
topology: v6e:2x2x1
jax: 0.10.0
libtpu: 0.0.40
codegen_flags: <defaults>
</compile_context>

<pallas_src>
import jax
import jax.numpy as jnp
from jax import lax
from jax.experimental import pallas as pl
from jax.experimental.pallas import tpu as pltpu

# ----------------------------- configuration --------------------------------
B = 2            # batch
S = 16           # sequence length
D = 32           # embedding_dim
T = 4            # type_num
V = 64           # vocab size (synthetic)
PROMPT_LEN = 3   # Prompt(prompt_length=3, ...)
PROMPT_PLACEHOLDER_ID = 1
UNK_ID = 2
MASK_ID = 3
MASK_SPLIT = True
LN_EPS = 1e-5

N_ROWS = 2 * B                                   # mask1 rows + mask2 rows
N_PAD = max(8, ((N_ROWS + 7) // 8) * 8)          # sublane-aligned output row count
OUT_PAD = 128                                    # lane-dense logits width (>= T)

# packed parameter-slab layout (bf16; every section starts on a 16-row boundary
# so all static sub-block loads hit aligned bf16 sublane tiles)
WD_ROW = 0                   # rows [0, D)         : dense weight, cols [0, D)
WF_ROW = D                   # rows [D, 2D)        : LN-folded fc weight, cols [0, OUT_PAD)
BD_ROW = 2 * D               # rows [2D, 2D+16)    : dense bias tiled across sublanes
BF_ROW = 2 * D + 16          # rows [2D+16, 2D+32) : folded fc bias tiled across sublanes
SLAB_ROWS = 2 * D + 32       # 96


# --------------------------- Pallas head kernel ------------------------------
def head_kernel(idx_ref, hid_ref, w_ref, o_ref, x_sc):
    """Fused gather -> dense -> LayerNorm -> fc on aligned slabs.

    idx_ref : SMEM int32[N_ROWS]            flat (b*S + s) positions of mask tokens
    hid_ref : VMEM f32[B*S, D]              flattened backbone hidden states
    w_ref   : VMEM bf16[SLAB_ROWS, OUT_PAD] packed parameter slab (one DMA)
    o_ref   : VMEM f32[N_PAD, OUT_PAD]      lane-dense logits; caller slices [:2B, :T]
    x_sc    : VMEM f32[N_PAD, D]            gathered-row scratch
    """
    # Gather the 2B mask-token rows via scalar-prefetched indices (no sel matmul).
    x_sc[...] = jnp.zeros_like(x_sc)                       # padded rows -> zeros
    for i in range(N_ROWS):                                # static unroll (4 rows)
        x_sc[pl.ds(i, 1), :] = hid_ref[pl.ds(idx_ref[i], 1), :]
    x = x_sc[...].astype(jnp.bfloat16)                     # bf16 MXU operand, f32 accumulate

    # dense: x @ Wd + bd   (bias pre-tiled across sublanes -> full-vreg add)
    h = jnp.dot(x, w_ref[WD_ROW:WD_ROW + D, 0:D],
                preferred_element_type=jnp.float32)
    h = h + w_ref[BD_ROW:BD_ROW + N_PAD, 0:D].astype(jnp.float32)

    # LayerNorm over features in f32 (v5e has no bf16 VPU/EUP); the affine
    # (gamma/beta) is folded into the fc weight/bias offline.
    # NOTE: padded (zero) x rows give h == bd, whose per-feature spread keeps
    # var > 0, so LN_EPS is not load-bearing for the padding rows.
    mu = jnp.mean(h, axis=-1, keepdims=True)
    xc = h - mu
    var = jnp.mean(xc * xc, axis=-1, keepdims=True)
    hn = xc * lax.rsqrt(var + LN_EPS)

    # fc (LN affine pre-folded): hn @ Wf' + bf' -> lane-dense unmasked [8,128] store.
    out = jnp.dot(hn.astype(jnp.bfloat16), w_ref[WF_ROW:WF_ROW + D, :],
                  preferred_element_type=jnp.float32)
    out = out + w_ref[BF_ROW:BF_ROW + N_PAD, :].astype(jnp.float32)
    o_ref[...] = out.astype(o_ref.dtype)


def ptuning_head(mask_idx, hidden_flat, w_slab):
    """mask_idx:int32[2B], hidden_flat:f32[B*S,D], w_slab:bf16[96,128] -> f32[N_PAD,128]."""
    bs = hidden_flat.shape[0]
    return pl.pallas_call(
        head_kernel,
        out_shape=jax.ShapeDtypeStruct((N_PAD, OUT_PAD), jnp.float32),
        grid_spec=pltpu.PrefetchScalarGridSpec(
            num_scalar_prefetch=1,                                        # mask_idx -> SMEM
            grid=(1,),
            in_specs=[
                pl.BlockSpec((bs, D), lambda i, idx: (0, 0)),             # hidden states
                pl.BlockSpec((SLAB_ROWS, OUT_PAD), lambda i, idx: (0, 0)),# packed params
            ],
            out_specs=pl.BlockSpec((N_PAD, OUT_PAD), lambda i, idx: (0, 0)),
            scratch_shapes=[pltpu.VMEM((N_PAD, D), jnp.float32)],
        ),
        # Single invocation today; if many (B,S) slabs are ever batched, add a leading
        # grid axis marked "parallel" so Mosaic can shard it across v7x's two TCs.
        compiler_params=pltpu.CompilerParams(dimension_semantics=("arbitrary",)),
    )(mask_idx, hidden_flat, w_slab)


# ------------------------- offline parameter folding -------------------------
def fold_head_params(params):
    """One-time prep (hoisted out of the jitted forward): fold LN affine into fc,
    pad everything lane-dense, tile biases across sublanes, pack into ONE bf16 slab."""
    wd_pad = jnp.pad(params["dense_w"], ((0, 0), (0, OUT_PAD - D)))          # [32,128]
    wf_pad = jnp.pad(params["fc_w"], ((0, 0), (0, OUT_PAD - T)))             # [32,128]
    wf_fold = params["ln_g"][:, None] * wf_pad                               # diag(gamma) @ Wf
    bf_fold = params["ln_b"] @ wf_pad + jnp.pad(params["fc_b"], (0, OUT_PAD - T))
    bd_blk = jnp.tile(jnp.pad(params["dense_b"], (0, OUT_PAD - D))[None, :], (16, 1))
    bf_blk = jnp.tile(bf_fold[None, :], (16, 1))
    slab = jnp.concatenate([wd_pad, wf_fold, bd_blk, bf_blk], axis=0)        # [96,128]
    return slab.astype(jnp.bfloat16)


# ------------------------------ JAX glue -------------------------------------
def prompt_encoder(input_ids, embedding_table, prompt_param):
    """Prompt.forward as a masked select (no nonzero / scatter)."""
    is_ph = input_ids == PROMPT_PLACEHOLDER_ID
    raw_ids = jnp.where(is_ph, UNK_ID, input_ids)
    raw_embed = embedding_table[raw_ids]                                     # [B, S, D]
    rank = jnp.cumsum(is_ph.astype(jnp.int32), axis=1) - 1                   # i-th placeholder
    onehot = jax.nn.one_hot(jnp.clip(rank, 0, PROMPT_LEN - 1),
                            PROMPT_LEN, dtype=raw_embed.dtype)               # [B, S, P]
    prompt_rows = onehot @ prompt_param                                      # [B, S, D]
    return jnp.where(is_ph[..., None], prompt_rows, raw_embed)


def mask_encoder(input_ids, input_embed, mask_param):
    """Mask.forward as a masked select (no nonzero / scatter)."""
    is_m = input_ids == MASK_ID
    rank = jnp.cumsum(is_m.astype(jnp.int32), axis=1) - 1
    onehot = jax.nn.one_hot(jnp.clip(rank, 0, 1), 2, dtype=input_embed.dtype)
    mask_rows = onehot @ mask_param[:2]                                      # [B, S, D]
    return jnp.where(is_m[..., None], mask_rows, input_embed)


def mask_flat_indices(input_ids):
    """int32[2B] flat positions: [1st mask of each row ..., 2nd mask of each row ...]."""
    bsz, seq = input_ids.shape
    is_m = input_ids == MASK_ID
    rank = jnp.cumsum(is_m.astype(jnp.int32), axis=1) - 1
    row_off = jnp.arange(bsz, dtype=jnp.int32) * seq
    idx = [row_off + jnp.argmax(is_m & (rank == m), axis=1).astype(jnp.int32)
           for m in (0, 1)]
    return jnp.concatenate(idx, axis=0)                                      # [2B]


def ptuning_forward(input_ids, attention_mask, params, w_slab):
    del attention_mask  # consumed only by the (identity) backbone stand-in
    input_embeds = prompt_encoder(input_ids, params["embedding_table"], params["prompt"])
    if MASK_SPLIT:
        input_embeds = mask_encoder(input_ids, input_embeds, params["mask"])

    # TODO(synk): BertModel(inputs_embeds=..., attention_mask=...) backbone is
    # untranslatable in a self-contained script; identity stand-in.
    output = input_embeds                                                    # [B, S, D]

    hidden_flat = output.reshape(B * S, D)                                   # [B*S, D]
    mask_idx = mask_flat_indices(input_ids)                                  # int32[2B]

    logits = ptuning_head(mask_idx, hidden_flat, w_slab)                     # [N_PAD, 128]
    logits = logits[:2 * B, :T]                                              # strip padding
    return logits[:B], logits[B:]


# --------------------------- pure-JAX reference -------------------------------
def reference_forward(input_ids, params):
    """Mirror of the original PyTorch semantics (nonzero + scatter + per-row gather), f32."""
    raw_ids = jnp.where(input_ids == PROMPT_PLACEHOLDER_ID, UNK_ID, input_ids)
    emb = params["embedding_table"][raw_ids]

    def prow(row_ids, row_embed):
        idx = jnp.nonzero(row_ids == PROMPT_PLACEHOLDER_ID, size=PROMPT_LEN)[0]
        return row_embed.at[idx].set(params["prompt"])
    emb = jax.vmap(prow)(input_ids, emb)

    def mrow(row_ids, row_embed):
        idx = jnp.nonzero(row_ids == MASK_ID, size=2)[0]
        return row_embed.at[idx].set(params["mask"][:2])
    emb = jax.vmap(mrow)(input_ids, emb)

    output = emb  # identity backbone stand-in

    def grow(row_ids, row_out):
        midx = jnp.nonzero(row_ids == MASK_ID, size=2)[0]
        return row_out[midx[0]], row_out[midx[1]]
    m1, m2 = jax.vmap(grow)(input_ids, output)

    def head(x):
        h = x @ params["dense_w"] + params["dense_b"]
        mu = h.mean(-1, keepdims=True)
        var = ((h - mu) ** 2).mean(-1, keepdims=True)
        hn = (h - mu) / jnp.sqrt(var + LN_EPS) * params["ln_g"] + params["ln_b"]
        return hn @ params["fc_w"] + params["fc_b"]
    return head(m1), head(m2)


# --------------------------------- main --------------------------------------
if __name__ == "__main__":
    key = jax.random.PRNGKey(0)
    keys = jax.random.split(key, 10)

    # deterministic synthetic parameters (shapes per the module __init__)
    params = {
        "embedding_table": jax.random.normal(keys[0], (V, D), jnp.float32) * 0.02,
        "prompt": jax.random.normal(keys[1], (PROMPT_LEN, D), jnp.float32),   # Prompt.prompt
        "dense_w": jax.random.normal(keys[3], (D, D), jnp.float32) * 0.05,    # nn.Linear(D, D)
        "dense_b": jax.random.normal(keys[4], (D,), jnp.float32) * 0.05,
        "ln_g": jnp.ones((D,), jnp.float32) + 0.1 * jax.random.normal(keys[5], (D,), jnp.float32),
        "ln_b": 0.1 * jax.random.normal(keys[6], (D,), jnp.float32),
        "fc_w": jax.random.normal(keys[7], (D, T), jnp.float32) * 0.05,       # nn.Linear(D, T)
        "fc_b": jax.random.normal(keys[8], (T,), jnp.float32) * 0.05,
    }
    # Mask.mask = bert_embedding([mask_id] * 3)
    params["mask"] = jnp.tile(params["embedding_table"][MASK_ID][None, :], (3, 1))

    # One-time parameter folding / packing (hoisted out of the jitted forward).
    w_slab = fold_head_params(params)

    # build input_ids: 3 prompt placeholders + 2 masks per row, rest regular tokens
    input_ids = jax.random.randint(keys[9], (B, S), 4, V).astype(jnp.int32)
    input_ids = input_ids.at[0, jnp.array([1, 2, 3])].set(PROMPT_PLACEHOLDER_ID)
    input_ids = input_ids.at[0, jnp.array([5, 9])].set(MASK_ID)
    input_ids = input_ids.at[1, jnp.array([0, 4, 7])].set(PROMPT_PLACEHOLDER_ID)
    input_ids = input_ids.at[1, jnp.array([2, 10])].set(MASK_ID)
    attention_mask = jnp.ones((B, S), jnp.int32)

    forward = jax.jit(ptuning_forward)
    predict1, predict2 = forward(input_ids, attention_mask, params, w_slab)
    jax.block_until_ready((predict1, predict2))

    # end-to-end sanity check against a pure-f32 JAX mirror of the PyTorch semantics.
    # Tolerance reflects bf16 MXU operands in the kernel (f32 accumulation & LN math).
    ref1, ref2 = reference_forward(input_ids, params)
    assert predict1.shape == (B, T) and predict2.shape == (B, T)
    assert jnp.allclose(predict1, ref1, atol=2e-2, rtol=2e-2), "predict1 mismatch"
    assert jnp.allclose(predict2, ref2, atol=2e-2, rtol=2e-2), "predict2 mismatch"

    print("KERNEL_OK")
</pallas_src>

<mosaic_0001>
module attributes {stable_mosaic.version = 11 : i64} {
  func.func @head_kernel(%arg0: i32, %arg1: memref<4xi32, #tpu.memory_space<smem>>, %arg2: memref<32x32xf32, #tpu.memory_space<vmem>>, %arg3: memref<96x128xbf16, #tpu.memory_space<vmem>>, %arg4: memref<8x128xf32, #tpu.memory_space<vmem>>, %arg5: memref<8x32xf32, #tpu.memory_space<vmem>>) attributes {dimension_semantics = [#tpu.dimension_semantics<arbitrary>], iteration_bounds = array<i64: 1>, scalar_prefetch = 1 : i64, scratch_operands = 1 : i64, tpu.core_type = #tpu.core_type<tc>, window_params = [{pipeline_mode = #tpu.pipeline_mode<synchronous>, transform_indices = @transform_0, window_bounds = array<i64: 32, 32>}, {pipeline_mode = #tpu.pipeline_mode<synchronous>, transform_indices = @transform_1, window_bounds = array<i64: 96, 128>}, {pipeline_mode = #tpu.pipeline_mode<synchronous>, transform_indices = @transform_2, window_bounds = array<i64: 8, 128>}]} {
    %cst = arith.constant 0.000000e+00 : f32
    %0 = vector.broadcast %cst : f32 to vector<8x32xf32>
    %c0 = arith.constant 0 : index
    %c0_0 = arith.constant 0 : index
    %1 = vector.load %arg5[%c0, %c0_0] : memref<8x32xf32, #tpu.memory_space<vmem>>, vector<8x32xf32>
    tpu.vector_store %arg5[%c0, %c0_0], %0 {strides = array<i32>} : memref<8x32xf32, #tpu.memory_space<vmem>>, vector<8x32xf32>,
    %c0_1 = arith.constant 0 : index
    %2 = memref.load %arg1[%c0_1] : memref<4xi32, #tpu.memory_space<smem>>
    %3 = arith.index_cast %2 : i32 to index
    %c0_2 = arith.constant 0 : index
    %4 = vector.load %arg2[%3, %c0_2] : memref<32x32xf32, #tpu.memory_space<vmem>>, vector<1x32xf32>
    %c0_3 = arith.constant 0 : index
    %c0_4 = arith.constant 0 : index
    %5 = vector.load %arg5[%c0_3, %c0_4] : memref<8x32xf32, #tpu.memory_space<vmem>>, vector<1x32xf32>
    tpu.vector_store %arg5[%c0_3, %c0_4], %4 {strides = array<i32>} : memref<8x32xf32, #tpu.memory_space<vmem>>, vector<1x32xf32>,
    %c1 = arith.constant 1 : index
    %6 = memref.load %arg1[%c1] : memref<4xi32, #tpu.memory_space<smem>>
    %7 = arith.index_cast %6 : i32 to index
    %c0_5 = arith.constant 0 : index
    %8 = vector.load %arg2[%7, %c0_5] : memref<32x32xf32, #tpu.memory_space<vmem>>, vector<1x32xf32>
    %c1_6 = arith.constant 1 : index
    %c0_7 = arith.constant 0 : index
    %9 = vector.load %arg5[%c1_6, %c0_7] : memref<8x32xf32, #tpu.memory_space<vmem>>, vector<1x32xf32>
    tpu.vector_store %arg5[%c1_6, %c0_7], %8 {strides = array<i32>} : memref<8x32xf32, #tpu.memory_space<vmem>>, vector<1x32xf32>,
    %c2 = arith.constant 2 : index
    %10 = memref.load %arg1[%c2] : memref<4xi32, #tpu.memory_space<smem>>
    %11 = arith.index_cast %10 : i32 to index
    %c0_8 = arith.constant 0 : index
    %12 = vector.load %arg2[%11, %c0_8] : memref<32x32xf32, #tpu.memory_space<vmem>>, vector<1x32xf32>
    %c2_9 = arith.constant 2 : index
    %c0_10 = arith.constant 0 : index
    %13 = vector.load %arg5[%c2_9, %c0_10] : memref<8x32xf32, #tpu.memory_space<vmem>>, vector<1x32xf32>
    tpu.vector_store %arg5[%c2_9, %c0_10], %12 {strides = array<i32>} : memref<8x32xf32, #tpu.memory_space<vmem>>, vector<1x32xf32>,
    %c3 = arith.constant 3 : index
    %14 = memref.load %arg1[%c3] : memref<4xi32, #tpu.memory_space<smem>>
    %15 = arith.index_cast %14 : i32 to index
    %c0_11 = arith.constant 0 : index
    %16 = vector.load %arg2[%15, %c0_11] : memref<32x32xf32, #tpu.memory_space<vmem>>, vector<1x32xf32>
    %c3_12 = arith.constant 3 : index
    %c0_13 = arith.constant 0 : index
    %17 = vector.load %arg5[%c3_12, %c0_13] : memref<8x32xf32, #tpu.memory_space<vmem>>, vector<1x32xf32>
    tpu.vector_store %arg5[%c3_12, %c0_13], %16 {strides = array<i32>} : memref<8x32xf32, #tpu.memory_space<vmem>>, vector<1x32xf32>,
    %c0_14 = arith.constant 0 : index
    %c0_15 = arith.constant 0 : index
    %18 = vector.load %arg5[%c0_14, %c0_15] : memref<8x32xf32, #tpu.memory_space<vmem>>, vector<8x32xf32>
    %19 = arith.truncf %18 : vector<8x32xf32> to vector<8x32xbf16>
    %c0_16 = arith.constant 0 : index
    %c0_17 = arith.constant 0 : index
    %20 = vector.load %arg3[%c0_16, %c0_17] : memref<96x128xbf16, #tpu.memory_space<vmem>>, vector<32x32xbf16>
    %cst_18 = arith.constant dense<0.000000e+00> : vector<8x32xf32>
    %21 = tpu.matmul %19, %20, %cst_18 {dimension_numbers = #tpu.dot_dimension_numbers<[1], [0], [0], [1], [0, 0, 1, 1], [], []>} : vector<8x32xbf16>, vector<32x32xbf16>, vector<8x32xf32> -> vector<8x32xf32>
    %c64 = arith.constant 64 : index
    %c0_19 = arith.constant 0 : index
    %22 = vector.load %arg3[%c64, %c0_19] : memref<96x128xbf16, #tpu.memory_space<vmem>>, vector<8x32xbf16>
    %23 = arith.extf %22 : vector<8x32xbf16> to vector<8x32xf32>
    %24 = arith.addf %21, %23 : vector<8x32xf32>
    %cst_20 = arith.constant dense<0.000000e+00> : vector<8xf32>
    %25 = vector.multi_reduction <add>, %24, %cst_20 [1] : vector<8x32xf32> to vector<8xf32>
    %26 = vector.shape_cast %25 : vector<8xf32> to vector<8x1xf32>
    %cst_21 = arith.constant 3.200000e+01 : f32
    %27 = vector.broadcast %cst_21 : f32 to vector<8x1xf32>
    %28 = arith.divf %26, %27 : vector<8x1xf32>
    %29 = vector.broadcast %28 : vector<8x1xf32> to vector<8x32xf32>
    %30 = arith.subf %24, %29 : vector<8x32xf32>
    %31 = arith.mulf %30, %30 : vector<8x32xf32>
    %cst_22 = arith.constant dense<0.000000e+00> : vector<8xf32>
    %32 = vector.multi_reduction <add>, %31, %cst_22 [1] : vector<8x32xf32> to vector<8xf32>
    %33 = vector.shape_cast %32 : vector<8xf32> to vector<8x1xf32>
    %cst_23 = arith.constant 3.200000e+01 : f32
    %34 = vector.broadcast %cst_23 : f32 to vector<8x1xf32>
    %35 = arith.divf %33, %34 : vector<8x1xf32>
    %cst_24 = arith.constant 9.99999974E-6 : f32
    %36 = vector.broadcast %cst_24 : f32 to vector<8x1xf32>
    %37 = arith.addf %35, %36 : vector<8x1xf32>
    %38 = math.rsqrt %37 : vector<8x1xf32>
    %39 = vector.broadcast %38 : vector<8x1xf32> to vector<8x32xf32>
    %40 = arith.mulf %30, %39 : vector<8x32xf32>
    %41 = arith.truncf %40 : vector<8x32xf32> to vector<8x32xbf16>
    %c32 = arith.constant 32 : index
    %c0_25 = arith.constant 0 : index
    %42 = vector.load %arg3[%c32, %c0_25] : memref<96x128xbf16, #tpu.memory_space<vmem>>, vector<32x128xbf16>
    %cst_26 = arith.constant dense<0.000000e+00> : vector<8x128xf32>
    %43 = tpu.matmul %41, %42, %cst_26 {dimension_numbers = #tpu.dot_dimension_numbers<[1], [0], [0], [1], [0, 0, 1, 1], [], []>} : vector<8x32xbf16>, vector<32x128xbf16>, vector<8x128xf32> -> vector<8x128xf32>
    %c80 = arith.constant 80 : index
    %c0_27 = arith.constant 0 : index
    %44 = vector.load %arg3[%c80, %c0_27] : memref<96x128xbf16, #tpu.memory_space<vmem>>, vector<8x128xbf16>
    %45 = arith.extf %44 : vector<8x128xbf16> to vector<8x128xf32>
    %46 = arith.addf %43, %45 : vector<8x128xf32>
    %c0_28 = arith.constant 0 : index
    %c0_29 = arith.constant 0 : index
    %47 = vector.load %arg4[%c0_28, %c0_29] : memref<8x128xf32, #tpu.memory_space<vmem>>, vector<8x128xf32>
    tpu.vector_store %arg4[%c0_28, %c0_29], %46 {strides = array<i32>} : memref<8x128xf32, #tpu.memory_space<vmem>>, vector<8x128xf32>,
    return
  }
  func.func @transform_0(%arg0: i32, %arg1: memref<4xi32, #tpu.memory_space<smem>>) -> (i32, i32) {
    %c0_i32 = arith.constant 0 : i32
    %c0_i32_0 = arith.constant 0 : i32
    %c0_i32_1 = arith.constant 0 : i32
    return %c0_i32, %c0_i32_0 : i32, i32
  }
  func.func @transform_1(%arg0: i32, %arg1: memref<4xi32, #tpu.memory_space<smem>>) -> (i32, i32) {
    %c0_i32 = arith.constant 0 : i32
    %c0_i32_0 = arith.constant 0 : i32
    %c0_i32_1 = arith.constant 0 : i32
    return %c0_i32, %c0_i32_0 : i32, i32
  }
  func.func @transform_2(%arg0: i32, %arg1: memref<4xi32, #tpu.memory_space<smem>>) -> (i32, i32) {
    %c0_i32 = arith.constant 0 : i32
    %c0_i32_0 = arith.constant 0 : i32
    %c0_i32_1 = arith.constant 0 : i32
    return %c0_i32, %c0_i32_0 : i32, i32
  }
}

</mosaic_0001>

<llo_original>
// kernel: ptuning_forward.1
$region0: #{ptuning_forward.1}
  #allocation0 [shape = 'u32[]', space=smem, size = 0x4, offset = 0x4, fixed_abs, tag = 'smem constant byte address 0x4 - core index']
  #allocation1 [shape = 'u32[144,128]{1,0:T(1,128)}', space=vmem, size = 0x12000, scoped, tag = 'internal scratch']
  #allocation2 [shape = 'f32[8,32]{1,0:T(8,128)}', space=vmem, size = 0x1000, scoped, tag = 'scratch operand']
  #allocation3 [shape = 's32[1]{0}', space=sflag, size = 0x4, scoped, tag = 'scoped memory for ptuning_forward.1']
  #allocation4 [shape = 'u8[512]{0}', space=smem, size = 0x200, scoped, tag = 'prefetched SMEM operand 0']
  %s0 = inlined_call_operand.vmem [shape: s32[4], index: 0, kind: input, shape index: {}]
  %s1 = inlined_call_operand.vmem [shape: f32[32,32], index: 1, kind: input, shape index: {}]
  %s2 = inlined_call_operand.vmem [shape: bf16[96,128], index: 2, kind: input, shape index: {}]
  %s3 = inlined_call_operand.vmem [shape: f32[8,128], index: 3, kind: output, shape index: {}]
  %s4 = sld [smem:[#allocation0]]
  $region18: #{ptuning_forward.1} parent=0
    _
  %s6 = ssub.s32 1, %s4
  %s7 = scalar_select 0, %s6, %s4
  %s8 = sshll.u32 %s0, 4
  %s9 = int_to_ptr.vmem [resolvable:$true] %s8
  %11 = dma.vmem_to_smem %s9, 16, [#allocation4], [#allocation3]
  %12 = dma.done [#allocation3], 16
  %13 = sfence
  // Predicated region
  $region2: #{ptuning_forward.1} parent=0 // pred_check
    _
  $region3: #{ptuning_forward.1} parent=0 // pred_check_branch
    %15 = sbr.rel (0) target = $region5
  $region4: #{ptuning_forward.1} parent=0 // pred_region
    _
  $region5: #{ptuning_forward.1} parent=0 // pred_fallthru
    _
  // Predicated region
  $region6: #{ptuning_forward.1} parent=0 // pred_check
    _
  $region7: #{ptuning_forward.1} parent=0 // pred_check_branch
    %17 = sbr.rel (0) target = $region9
  $region8: #{ptuning_forward.1} parent=0 // pred_region
    _
  $region9: #{ptuning_forward.1} parent=0 // pred_fallthru
    _
  %vm19 = vcmask 261120
  %20 = vst.msk [vmem:[#allocation2] sm:$0xff] %vm19, 0.0
  %s21 = sld [smem:[#allocation4]]
  %s22 = scalar_lea.vmem %s1, %s21
  %v23 = vld [vmem:[%s22] sm:$0x1]
  %vm24 = vcmask 253952
  %25 = vst.msk [vmem:[#allocation2] sm:$0x1] %vm24, %v23
  %s26 = sld [smem:[#allocation4 + $0x1]]
  %s27 = scalar_lea.vmem %s1, %s26
  %v28 = vld [vmem:[%s27] sm:$0x1]
  %29 = vst.msk [vmem:[#allocation2 + $0x1] sm:$0x1] %vm24, %v28
  %s30 = sld [smem:[#allocation4 + $0x2]]
  %s31 = scalar_lea.vmem %s1, %s30
  %v32 = vld [vmem:[%s31] sm:$0x1]
  %33 = vst.msk [vmem:[#allocation2 + $0x2] sm:$0x1] %vm24, %v32
  %s34 = sld [smem:[#allocation4 + $0x3]]
  %s35 = scalar_lea.vmem %s1, %s34
  %v36 = vld [vmem:[%s35] sm:$0x1]
  %37 = vst.msk [vmem:[#allocation2 + $0x3] sm:$0x1] %vm24, %v36
  %v38 = vld [vmem:[#allocation2] sm:$0xff]
  %v39 = vpack.c.bf16 %v38, %v38
  %v40 = vld [vmem:[%s2] sm:$0xf]
  %v41 = vld [vmem:[%s2 + $0x4] sm:$0xf]
  %v42 = vld [vmem:[%s2 + $0x8] sm:$0xf]
  %v43 = vld [vmem:[%s2 + $0xc] sm:$0xf]
  %v44 = vld [vmem:[%s2 + $0x20] sm:$0xf]
  %v45 = vunpack.c.l.bf16 %v44
  %v50 = vunpack.c.l.b16 %v40
  %v51 = vunpack.c.l.b16 %v41
  %v52 = vunpack.c.l.b16 %v42
  %v53 = vunpack.c.l.b16 %v43
  %v54 = vpack.c.b16 %v51, %v50
  %v55 = vpack.c.b16 %v53, %v52
  %v59 = vsel %vm19, %v39, 0
  %61 = vmatprep.subr.bf16.mxu0 0
  %62 = vmatpush1.bf16.msra.mxu0 0
  %63 = vmatprep.subr.bf16.mxu0 0
  %64 = vmatpush1.bf16.msra.mxu0 0
  %65 = vmatprep.subr.bf16.mxu0 0
  %66 = vmatpush1.bf16.msra.mxu0 0
  %67 = vmatprep.subr.bf16.mxu0 0
  %68 = vmatpush1.bf16.msra.mxu0 0
  %69 = vmatprep.subr.bf16.mxu0 0
  %70 = vmatpush1.bf16.msra.mxu0 0
  %71 = vmatprep.subr.bf16.mxu0 0
  %72 = vmatpush1.bf16.msra.mxu0 0
  %73 = vmatprep.subr.bf16.mxu0 0
  %74 = vmatpush1.bf16.msra.mxu0 %v55
  %75 = vmatprep.subr.bf16.mxu0 0
  %76 = vmatpush1.bf16.msra.mxu0 %v54
  %77 = vmatprep.subr.bf16.mxu0 0
  %78 = vmatpush2.bf16.msra.mxu0 0
  %79 = vmatprep.subr.bf16.mxu0 0
  %80 = vmatpush2.bf16.msra.mxu0 0
  %81 = vmatprep.subr.bf16.mxu0 0
  %82 = vmatpush2.bf16.msra.mxu0 0
  %83 = vmatprep.subr.bf16.mxu0 0
  %84 = vmatpush2.bf16.msra.mxu0 0
  %85 = vmatprep.subr.bf16.mxu0 0
  %86 = vmatpush2.bf16.msra.mxu0 0
  %87 = vmatprep.subr.bf16.mxu0 0
  %88 = vmatpush2.bf16.msra.mxu0 0
  %89 = vmatprep.subr.bf16.mxu0 0
  %90 = vmatpush2.bf16.msra.mxu0 0
  %91 = vmatprep.subr.bf16.mxu0 0
  %92 = vmatpush2.bf16.msra.mxu0 0
  %93 = vmatprep.mubr.bf16.mxu0 0
  %94 = vmatmul.mubr.bf16.gmra.mxu0 %v59
  %v95 = vpop.f32.mrf.mxu0
  %v96 = vadd.f32 %v45, %v95
  %v97 = vpop.f32.mrf.mxu0
  %v98 = vpop.f32.mrf.mxu0
  %v99 = vpop.f32.mrf.mxu0
  %100 = vdwg.mxu0
  %v101 = vsel %vm19, %v96, 0.0
  %102 = vadd.xlane.f32.xlu0 %v101
  %v103 = vpop.xlane.xlu0 %102
  %v104 = vrcp.pop 32.0
  %v105 = vmul.f32 %v103, %v104
  %v106 = vsub.f32 %v96, %v105
  %v107 = vmul.f32 %v106, %v106
  %v108 = vsel %vm19, %v107, 0.0
  %109 = vadd.xlane.f32.xlu0 %v108
  %v110 = vpop.xlane.xlu0 %109
  %v111 = vmul.f32 %v110, %v104
  %v112 = vadd.f32 %v111, 1e-05
  %v113 = vrsqrt.pop %v112
  %v114 = vmul.f32 %v106, %v113
  %v115 = vpack.c.bf16 %v114, %v114
  %v116 = vld [vmem:[%s2 + $0x10] sm:$0xf]
  %v117 = vld [vmem:[%s2 + $0x14] sm:$0xf]
  %v118 = vld [vmem:[%s2 + $0x18] sm:$0xf]
  %v119 = vld [vmem:[%s2 + $0x1c] sm:$0xf]
  %v120 = vld [vmem:[%s2 + $0x28] sm:$0xf]
  %v121 = vunpack.c.l.bf16 %v120
  %v126 = vunpack.c.l.b16 %v116
  %v127 = vunpack.c.l.b16 %v117
  %v128 = vunpack.c.l.b16 %v118
  %v129 = vunpack.c.l.b16 %v119
  %v130 = vpack.c.b16 %v127, %v126
  %v131 = vpack.c.b16 %v129, %v128
  %v135 = vsel %vm19, %v115, 0
  %137 = vmatprep.subr.bf16.mxu0 0
  %138 = vmatpush1.bf16.msra.mxu0 0
  %139 = vmatprep.subr.bf16.mxu0 0
  %140 = vmatpush1.bf16.msra.mxu0 0
  %141 = vmatprep.subr.bf16.mxu0 0
  %142 = vmatpush1.bf16.msra.mxu0 0
  %143 = vmatprep.subr.bf16.mxu0 0
  %144 = vmatpush1.bf16.msra.mxu0 0
  %145 = vmatprep.subr.bf16.mxu0 0
  %146 = vmatpush1.bf16.msra.mxu0 0
  %147 = vmatprep.subr.bf16.mxu0 0
  %148 = vmatpush1.bf16.msra.mxu0 0
  %149 = vmatprep.subr.bf16.mxu0 0
  %150 = vmatpush1.bf16.msra.mxu0 %v131
  %151 = vmatprep.subr.bf16.mxu0 0
  %152 = vmatpush1.bf16.msra.mxu0 %v130
  %153 = vmatprep.subr.bf16.mxu0 0
  %154 = vmatpush2.bf16.msra.mxu0 0
  %155 = vmatprep.subr.bf16.mxu0 0
  %156 = vmatpush2.bf16.msra.mxu0 0
  %157 = vmatprep.subr.bf16.mxu0 0
  %158 = vmatpush2.bf16.msra.mxu0 0
  %159 = vmatprep.subr.bf16.mxu0 0
  %160 = vmatpush2.bf16.msra.mxu0 0
  %161 = vmatprep.subr.bf16.mxu0 0
  %162 = vmatpush2.bf16.msra.mxu0 0
  %163 = vmatprep.subr.bf16.mxu0 0
  %164 = vmatpush2.bf16.msra.mxu0 0
  %165 = vmatprep.subr.bf16.mxu0 0
  %166 = vmatpush2.bf16.msra.mxu0 0
  %167 = vmatprep.subr.bf16.mxu0 0
  %168 = vmatpush2.bf16.msra.mxu0 0
  %169 = vmatprep.mubr.bf16.mxu0 0
  %170 = vmatmul.mubr.bf16.gmra.mxu0 %v135
  %v171 = vpop.f32.mrf.mxu0
  %v172 = vadd.f32 %v121, %v171
  %v173 = vpop.f32.mrf.mxu0
  %v174 = vpop.f32.mrf.mxu0
  %v175 = vpop.f32.mrf.mxu0
  %176 = vdwg.mxu0
  %177 = vst [vmem:[%s3] sm:$0xff] %v172
  // Predicated region
  $region10: #{ptuning_forward.1} parent=0 // pred_check
    _
  $region11: #{ptuning_forward.1} parent=0 // pred_check_branch
    %179 = sbr.rel (0) target = $region13
  $region12: #{ptuning_forward.1} parent=0 // pred_region
    _
  $region13: #{ptuning_forward.1} parent=0 // pred_fallthru
    _
  // Predicated region
  $region14: #{ptuning_forward.1} parent=0 // pred_check
    _
  $region15: #{ptuning_forward.1} parent=0 // pred_check_branch
    %181 = sbr.rel (0) target = $region17
  $region16: #{ptuning_forward.1} parent=0 // pred_region
    _
  $region17: #{ptuning_forward.1} parent=0 // pred_fallthru
    _

</llo_original>
